<compile_context>
chip_gen: v5e
topology: v5e:2x2
jax: 0.10.0
libtpu: 0.0.40
codegen_flags: <defaults>
</compile_context>

<pallas_src>
import functools

import jax
import jax.numpy as jnp
from jax.experimental import pallas as pl
from jax.experimental.pallas import tpu as pltpu


MXU_DTYPE = jnp.bfloat16   # MXU operands; all accumulation stays f32.


# ----------------------------------------------------------------------------
# Small helpers
# ----------------------------------------------------------------------------
def _round_up(x, m):
    return ((x + m - 1) // m) * m


def _pad2(x, rows, cols=None, dtype=None):
    r, c = x.shape
    cols = c if cols is None else cols
    dtype = x.dtype if dtype is None else dtype
    out = jnp.zeros((rows, cols), dtype)
    return out.at[:r, :c].set(x.astype(dtype))


def _sigmoid(x):
    return 1.0 / (1.0 + jnp.exp(-x))


def _vmem_spec(shape):
    # Full-array block (block == full array, so the (8,128) rule is satisfied).
    return pl.BlockSpec(shape, lambda i: (0,) * len(shape))


def _smem_spec():
    # Scalar arguments (temperature, bilinear bias) live in SMEM.
    return pl.BlockSpec(memory_space=pltpu.MemorySpace.SMEM)


def _vmem_limit(est_bytes):
    # Explicit scoped-VMEM limit: 2x the estimated footprint plus slack,
    # floored at the default 32 MiB and capped below useful physical limits.
    return int(min(120 << 20, max(32 << 20, 2 * int(est_bytes) + (8 << 20))))


# ----------------------------------------------------------------------------
# Launch 1: GIN layer 1 + layer-2 projection, both views per row stripe.
#   t_v = relu(((1+eps)*x_v + A @ x_v) @ W1 + b1) @ W2          v in {1,2}
# x1|x2 are concatenated along features -> one aggregation matmul per stripe.
# ----------------------------------------------------------------------------
def _gin1_proj_kernel(a_ref, x12_ref, w1_ref, b1_ref, w2_ref, o_ref,
                      *, eps, tm, d_in, nhp):
    i = pl.program_id(0)
    row0 = pl.multiple_of(i * tm, tm)
    a = a_ref[...]                       # (tm, npad) bf16 adjacency stripe
    w1 = w1_ref[...]                     # (d_in, nhid) bf16, resident
    w2 = w2_ref[...]                     # (nhid, nhp)  bf16, resident
    b1 = b1_ref[...]                     # (1, nhid)    f32

    # Aggregate both views with ONE matmul (contract npad, width 2*d_in).
    agg12 = jnp.dot(a, x12_ref[...], preferred_element_type=jnp.float32)   # (tm, 2*d_in)
    x12_t = x12_ref[pl.ds(row0, tm), :].astype(jnp.float32)                # self term
    h12 = (1.0 + eps) * x12_t + agg12

    def proj(h_pre):                                         # (tm, d_in) f32
        z = jnp.dot(h_pre.astype(w1.dtype), w1,
                    preferred_element_type=jnp.float32) + b1
        z = jnp.maximum(z, 0.0)                              # layer-1 ReLU
        return jnp.dot(z.astype(w2.dtype), w2,
                       preferred_element_type=jnp.float32)   # (tm, nhp)

    # Lane-aligned column halves of the output block (nhp is a multiple of 128).
    o_ref[:, :nhp] = proj(h12[:, :d_in]).astype(o_ref.dtype)
    o_ref[:, nhp:] = proj(h12[:, d_in:]).astype(o_ref.dtype)


def gin1_project(adj, x12, w1, b1, w2, *, eps, tm, nhp):
    npad = adj.shape[0]
    d2 = x12.shape[1]
    d_in = d2 // 2
    nhid = w1.shape[1]
    est = (x12.size * 2 + w1.size * 2 + w2.size * 2 + b1.size * 4   # resident
           + 2 * tm * npad * 2                                      # A stripe, dbl buffered
           + 2 * tm * 2 * nhp * 2                                   # output, dbl buffered
           + 4 * tm * max(nhid, 2 * nhp) * 4)                       # f32 intermediates
    return pl.pallas_call(
        functools.partial(_gin1_proj_kernel, eps=eps, tm=tm, d_in=d_in, nhp=nhp),
        out_shape=jax.ShapeDtypeStruct((npad, 2 * nhp), MXU_DTYPE),
        grid=(npad // tm,),
        in_specs=[pl.BlockSpec((tm, npad), lambda i: (i, 0)),     # A row stripe
                  pl.BlockSpec((npad, d2), lambda i: (0, 0)),     # x1|x2 (resident)
                  pl.BlockSpec(w1.shape, lambda i: (0, 0)),       # W1 (resident)
                  pl.BlockSpec(b1.shape, lambda i: (0, 0)),       # b1 (resident)
                  pl.BlockSpec(w2.shape, lambda i: (0, 0))],      # W2 (resident)
        out_specs=pl.BlockSpec((tm, 2 * nhp), lambda i: (i, 0)),
        compiler_params=pltpu.CompilerParams(
            dimension_semantics=("parallel",),                    # v7x: shard rows over 2 TCs
            vmem_limit_bytes=_vmem_limit(est)),
    )(adj, x12, w1, b1, w2)


# ----------------------------------------------------------------------------
# Launch 2: layer-2 aggregation on the already-projected (nhp-wide) features.
#   h_v = (1+eps)*t_v + A @ t_v + b2        (exact reorder: layer 2 has no ReLU)
# ----------------------------------------------------------------------------
def _gin2_agg_kernel(a_ref, t12_ref, b2_ref, o1_ref, o2_ref, *, eps, tm, nhp):
    i = pl.program_id(0)
    row0 = pl.multiple_of(i * tm, tm)
    agg = jnp.dot(a_ref[...], t12_ref[...],
                  preferred_element_type=jnp.float32)              # (tm, 2*nhp)
    t12_t = t12_ref[pl.ds(row0, tm), :].astype(jnp.float32)
    out = (1.0 + eps) * t12_t + agg
    b2 = b2_ref[...]
    o1_ref[...] = (out[:, :nhp] + b2).astype(o1_ref.dtype)
    o2_ref[...] = (out[:, nhp:] + b2).astype(o2_ref.dtype)


def gin2_aggregate(adj, t12, b2, *, eps, tm, nhp):
    npad = adj.shape[0]
    est = (t12.size * 2 + b2.size * 4
           + 2 * tm * npad * 2
           + 2 * 2 * tm * nhp * 4
           + 3 * tm * 2 * nhp * 4)
    o_spec = pl.BlockSpec((tm, nhp), lambda i: (i, 0))
    return pl.pallas_call(
        functools.partial(_gin2_agg_kernel, eps=eps, tm=tm, nhp=nhp),
        out_shape=(jax.ShapeDtypeStruct((npad, nhp), jnp.float32),
                   jax.ShapeDtypeStruct((npad, nhp), jnp.float32)),
        grid=(npad // tm,),
        in_specs=[pl.BlockSpec((tm, npad), lambda i: (i, 0)),       # A row stripe
                  pl.BlockSpec((npad, 2 * nhp), lambda i: (0, 0)),  # t1|t2 (resident)
                  pl.BlockSpec(b2.shape, lambda i: (0, 0))],
        out_specs=(o_spec, o_spec),
        compiler_params=pltpu.CompilerParams(
            dimension_semantics=("parallel",),
            vmem_limit_bytes=_vmem_limit(est)),
    )(adj, t12, b2)


# ----------------------------------------------------------------------------
# Launch 3: fused Clusterator + S@Z + sigmoid + AvgReadout + both discriminators.
# Soft k-means runs in a (K, N) lane-dense transposed layout, fully unrolled.
# All discriminator outputs are (N, 1) columns (no big transposes in-kernel).
# ----------------------------------------------------------------------------
def _cluster_tail_kernel(temp_ref, b_ref, h1_ref, h2_ref, mu0_ref, w_ref,
                         sc1_ref, sc2_ref, cc1_ref, cc2_ref, *, num_iter):
    temp = temp_ref[0]
    h1 = h1_ref[...]                       # (N, F) f32, read once
    h2 = h2_ref[...]
    n, f = h1.shape

    # ----- Clusterator: data = h / (||h|| + 1e-6), soft k-means from mu_init -----
    inv = pl.reciprocal(jnp.sqrt(jnp.sum(h1 * h1, axis=1, keepdims=True)) + 1e-6,
                        approx=True)
    data = h1 * inv                        # (N, F)
    data_t = data.T                        # (F, N): one transpose, reused every step

    ones_n = jnp.ones((n, 1), jnp.float32)

    def softmax_k(logits_t):               # softmax over the K rows -> per-lane VPU work
        m = jnp.max(logits_t, axis=0, keepdims=True)
        e = jnp.exp(logits_t - m)
        return e * pl.reciprocal(jnp.sum(e, axis=0, keepdims=True), approx=True)

    def kmeans_step(dat, dat_t, mu):
        mu_n = mu * jax.lax.rsqrt(jnp.sum(mu * mu, axis=1, keepdims=True))     # (K, F)
        dist_t = jnp.dot(mu_n, dat_t, preferred_element_type=jnp.float32)      # (K, N)
        r_t = softmax_k(temp * dist_t)                                         # (K, N)
        cluster_mean = jnp.dot(r_t, dat, preferred_element_type=jnp.float32)   # (K, F)
        cluster_r = jnp.dot(r_t, ones_n, preferred_element_type=jnp.float32)   # (K, 1)
        # exact division: cluster_r can be tiny when a cluster collapses.
        return cluster_mean / cluster_r

    mu = mu0_ref[...].astype(jnp.float32)
    for _ in range(num_iter):              # static trip count -> fully unrolled
        mu = kmeans_step(data, data_t, mu)

    # Second cluster() call: re-normalise data, one more step.
    inv2 = pl.reciprocal(jnp.sqrt(jnp.sum(data * data, axis=1, keepdims=True)) + 1e-6,
                         approx=True)
    data2 = data * inv2
    data2_t = data2.T
    mu = kmeans_step(data2, data2_t, mu)

    # Final soft assignment S and c2 = sigmoid(S @ Z).
    # TODO(synk): final assignment uses the un-normalised updated centroids, matching
    # the previously validated implementation; exact Clusterator internals are not in
    # the prompt.
    s_t = softmax_k(temp * jnp.dot(mu, data2_t, preferred_element_type=jnp.float32))
    zt = jax.lax.dot_general(s_t, mu, (((0,), (0,)), ((), ())),
                             preferred_element_type=jnp.float32)               # (N, F)
    c2 = _sigmoid(zt)

    # ----- AvgReadout(msk=None) + sigmoid + bilinear Discriminator ---------------
    c = _sigmoid(jnp.mean(h1, axis=0, keepdims=True))                          # (1, F)
    # torch Bilinear: sc[n] = h[n] @ W @ c^T + b.  Compute u = W @ c^T once (F,1),
    # then sc = h @ u as canonical (N,F)x(F,1) matvecs -- no (N,F) transposes.
    u = jax.lax.dot_general(w_ref[...], c, (((1,), (1,)), ((), ())),
                            preferred_element_type=jnp.float32)                # (F, 1)
    bias = b_ref[0]
    sc1_ref[...] = jnp.dot(h1, u, preferred_element_type=jnp.float32) + bias
    sc2_ref[...] = jnp.dot(h2, u, preferred_element_type=jnp.float32) + bias

    # ----- Discriminator_cluster: cc[n] = <h[n], c2[n]> as a matvec against ones --
    ones_f = jnp.ones((f, 1), jnp.float32)
    cc1_ref[...] = jnp.dot(h1 * c2, ones_f, preferred_element_type=jnp.float32)
    cc2_ref[...] = jnp.dot(h2 * c2, ones_f, preferred_element_type=jnp.float32)


def cluster_disc_tail(h1, h2, mu0, disc_w, disc_b, temp, *, num_iter):
    n, f = h1.shape
    col = jax.ShapeDtypeStruct((n, 1), jnp.float32)
    est = 12 * n * f * 4 + disc_w.size * 4 + mu0.size * 4
    sc1, sc2, cc1, cc2 = pl.pallas_call(
        functools.partial(_cluster_tail_kernel, num_iter=num_iter),
        out_shape=(col, col, col, col),
        grid=(1,),
        in_specs=[_smem_spec(), _smem_spec(),
                  _vmem_spec(h1.shape), _vmem_spec(h2.shape),
                  _vmem_spec(mu0.shape), _vmem_spec(disc_w.shape)],
        out_specs=(_vmem_spec((n, 1)),) * 4,
        compiler_params=pltpu.CompilerParams(vmem_limit_bytes=_vmem_limit(est)),
    )(temp, disc_b, h1, h2, mu0, disc_w)
    # torch: logits = cat((sc_1, sc_2), 1) with sc_* of shape (1, N)
    ret = jnp.concatenate([sc1.reshape(1, n), sc2.reshape(1, n)], axis=1)
    ret2 = jnp.concatenate([cc1.reshape(1, n), cc2.reshape(1, n)], axis=1)
    return ret, ret2


# ----------------------------------------------------------------------------
# Parameter initialisation (deterministic, synthetic — no checkpoint loading)
# ----------------------------------------------------------------------------
def init_params(key, n_in, n_hid, n_h, k):
    ks = jax.random.split(key, 4)

    def glorot(kk, shape):
        lim = jnp.sqrt(6.0 / (shape[0] + shape[1]))
        return jax.random.uniform(kk, shape, jnp.float32, -lim, lim)

    return dict(
        w1=glorot(ks[0], (n_in, n_hid)),
        b1=jnp.zeros((1, n_hid), jnp.float32),
        w2=glorot(ks[1], (n_hid, n_h)),
        b2=jnp.zeros((1, n_h), jnp.float32),
        disc_w=glorot(ks[2], (n_h, n_h)),          # nn.Bilinear(n_h, n_h, 1).weight[0]
        disc_b=jnp.zeros((1,), jnp.float32),       # nn.Bilinear bias
        mu_init=jax.random.uniform(ks[3], (k, n_h), jnp.float32),  # Clusterator init ~ torch.rand
    )


# ----------------------------------------------------------------------------
# GIC_GIN.forward
# ----------------------------------------------------------------------------
def gic_gin_forward(params, seq1, seq2, g, sparse, msk, samp_bias1, samp_bias2,
                    cluster_temp, num_cluster_iter=10):
    del sparse              # dense adjacency path only
    del msk                 # msk is None -> AvgReadout falls back to plain mean
    del samp_bias1, samp_bias2   # None -> no additive discriminator bias
    # GINNet(net_params=[n_in, 512, n_h]) on both views.
    # TODO(synk): exact GINNet internals (MLP depth / batch-norm / learned eps) are
    # not in the prompt; a standard 2-layer sum-aggregation GIN is used.
    x1, x2 = seq1[0], seq2[0]
    n, d_in = x1.shape
    nhid = params["w1"].shape[1]
    nh = params["w2"].shape[1]
    nhp = _round_up(nh, 128)        # lane-dense embedding width (exact zero-padding)

    npad8 = _round_up(n, 8)
    # Choose tm so the row grid has >= 2 steps whenever possible (v7x: both TCs busy).
    tm = min(256, max(8, _round_up((npad8 + 1) // 2, 8)))
    npad = _round_up(npad8, tm)

    a_p = _pad2(g, npad, npad, MXU_DTYPE)           # 0/1 adjacency -> exact in bf16
    x12 = jnp.concatenate([_pad2(x1, npad, dtype=MXU_DTYPE),
                           _pad2(x2, npad, dtype=MXU_DTYPE)], axis=1)   # (npad, 2*d_in)

    w1 = params["w1"].astype(MXU_DTYPE)                    # (d_in, nhid)
    b1 = params["b1"].astype(jnp.float32)                  # (1, nhid)
    w2 = _pad2(params["w2"], nhid, nhp, MXU_DTYPE)         # (nhid, nhp), zero-padded cols
    b2 = _pad2(params["b2"], 1, nhp, jnp.float32)          # (1, nhp)

    # Launch 1: layer-1 aggregation (+W1, ReLU) fused with the layer-2 projection W2.
    t12 = gin1_project(a_p, x12, w1, b1, w2, eps=0.0, tm=tm, nhp=nhp)
    # Launch 2: layer-2 aggregation over the projected nhp-wide features (+ b2).
    h1_p, h2_p = gin2_aggregate(a_p, t12, b2, eps=0.0, tm=tm, nhp=nhp)
    h1, h2 = h1_p[:n], h2_p[:n]      # drop padded rows before the reductions

    mu0 = _pad2(params["mu_init"], params["mu_init"].shape[0], nhp, jnp.float32)
    disc_w = _pad2(params["disc_w"], nhp, nhp, jnp.float32)
    temp = jnp.asarray([cluster_temp], jnp.float32)

    # Launch 3: Clusterator + S@Z + sigmoid + AvgReadout + both discriminators.
    return cluster_disc_tail(h1, h2, mu0, disc_w, params["disc_b"], temp,
                             num_iter=num_cluster_iter)


# ----------------------------------------------------------------------------
# Demo
# ----------------------------------------------------------------------------
if __name__ == "__main__":
    key = jax.random.PRNGKey(0)
    N, N_IN, N_HID, N_H, K = 8, 16, 512, 32, 4
    CLUSTER_TEMP = 10.0

    k1, k2, k3, k4 = jax.random.split(key, 4)
    seq1 = jax.random.normal(k1, (1, N, N_IN), jnp.float32)
    # corrupted view (row-shuffled features, as in GIC training)
    seq2 = seq1[:, jax.random.permutation(k2, N), :]

    adj = (jax.random.uniform(k3, (N, N)) < 0.4).astype(jnp.float32)
    adj = jnp.maximum(adj, adj.T)                                # symmetric
    adj = adj.at[jnp.arange(N), jnp.arange(N)].set(0.0)          # GIN adds (1+eps)*self

    params = init_params(k4, N_IN, N_HID, N_H, K)

    ret, ret2 = gic_gin_forward(params, seq1, seq2, adj,
                                sparse=False, msk=None,
                                samp_bias1=None, samp_bias2=None,
                                cluster_temp=CLUSTER_TEMP)
    jax.block_until_ready((ret, ret2))

    assert ret.shape == (1, 2 * N) and ret.dtype == jnp.float32
    assert ret2.shape == (1, 2 * N) and ret2.dtype == jnp.float32
    assert bool(jnp.all(jnp.isfinite(ret))) and bool(jnp.all(jnp.isfinite(ret2)))
    print("KERNEL_OK")
</pallas_src>

<mosaic_0001>
module attributes {stable_mosaic.version = 11 : i64} {
  func.func @_gin1_proj_kernel(%arg0: i32, %arg1: memref<8x8xbf16, #tpu.memory_space<vmem>>, %arg2: memref<8x32xbf16, #tpu.memory_space<vmem>>, %arg3: memref<16x512xbf16, #tpu.memory_space<vmem>>, %arg4: memref<1x512xf32, #tpu.memory_space<vmem>>, %arg5: memref<512x128xbf16, #tpu.memory_space<vmem>>, %arg6: memref<8x256xbf16, #tpu.memory_space<vmem>>) attributes {dimension_semantics = [#tpu.dimension_semantics<parallel>], iteration_bounds = array<i64: 1>, scalar_prefetch = 0 : i64, scratch_operands = 0 : i64, tpu.core_type = #tpu.core_type<tc>, window_params = [{transform_indices = @transform_0, window_bounds = array<i64: 8, 8>}, {pipeline_mode = #tpu.pipeline_mode<synchronous>, transform_indices = @transform_1, window_bounds = array<i64: 8, 32>}, {pipeline_mode = #tpu.pipeline_mode<synchronous>, transform_indices = @transform_2, window_bounds = array<i64: 16, 512>}, {pipeline_mode = #tpu.pipeline_mode<synchronous>, transform_indices = @transform_3, window_bounds = array<i64: 1, 512>}, {pipeline_mode = #tpu.pipeline_mode<synchronous>, transform_indices = @transform_4, window_bounds = array<i64: 512, 128>}, {transform_indices = @transform_5, window_bounds = array<i64: 8, 256>}]} {
    %c8_i32 = arith.constant 8 : i32
    %0 = arith.muli %arg0, %c8_i32 : i32
    %1 = tpu.assume_multiple %0, 8 : i32
    %c0 = arith.constant 0 : index
    %c0_0 = arith.constant 0 : index
    %2 = vector.load %arg1[%c0, %c0_0] : memref<8x8xbf16, #tpu.memory_space<vmem>>, vector<8x8xbf16>
    %c0_1 = arith.constant 0 : index
    %c0_2 = arith.constant 0 : index
    %3 = vector.load %arg3[%c0_1, %c0_2] : memref<16x512xbf16, #tpu.memory_space<vmem>>, vector<16x512xbf16>
    %c0_3 = arith.constant 0 : index
    %c0_4 = arith.constant 0 : index
    %4 = vector.load %arg5[%c0_3, %c0_4] : memref<512x128xbf16, #tpu.memory_space<vmem>>, vector<512x128xbf16>
    %c0_5 = arith.constant 0 : index
    %c0_6 = arith.constant 0 : index
    %5 = vector.load %arg4[%c0_5, %c0_6] : memref<1x512xf32, #tpu.memory_space<vmem>>, vector<1x512xf32>
    %c0_7 = arith.constant 0 : index
    %c0_8 = arith.constant 0 : index
    %6 = vector.load %arg2[%c0_7, %c0_8] : memref<8x32xbf16, #tpu.memory_space<vmem>>, vector<8x32xbf16>
    %cst = arith.constant dense<0.000000e+00> : vector<8x32xf32>
    %7 = tpu.matmul %2, %6, %cst {dimension_numbers = #tpu.dot_dimension_numbers<[1], [0], [0], [1], [0, 0, 1, 1], [], []>} : vector<8x8xbf16>, vector<8x32xbf16>, vector<8x32xf32> -> vector<8x32xf32>
    %8 = arith.index_cast %1 : i32 to index
    %c0_9 = arith.constant 0 : index
    %9 = vector.load %arg2[%8, %c0_9] : memref<8x32xbf16, #tpu.memory_space<vmem>>, vector<8x32xbf16>
    %10 = arith.extf %9 : vector<8x32xbf16> to vector<8x32xf32>
    %cst_10 = arith.constant 1.000000e+00 : f32
    %11 = vector.broadcast %cst_10 : f32 to vector<8x32xf32>
    %12 = arith.mulf %11, %10 : vector<8x32xf32>
    %13 = arith.addf %12, %7 : vector<8x32xf32>
    %14 = vector.extract_strided_slice %13 {offsets = [0, 0], sizes = [8, 16], strides = [1, 1]} : vector<8x32xf32> to vector<8x16xf32>
    %15 = arith.truncf %14 : vector<8x16xf32> to vector<8x16xbf16>
    %cst_11 = arith.constant dense<0.000000e+00> : vector<8x512xf32>
    %16 = tpu.matmul %15, %3, %cst_11 {dimension_numbers = #tpu.dot_dimension_numbers<[1], [0], [0], [1], [0, 0, 1, 1], [], []>} : vector<8x16xbf16>, vector<16x512xbf16>, vector<8x512xf32> -> vector<8x512xf32>
    %17 = vector.broadcast %5 : vector<1x512xf32> to vector<8x512xf32>
    %18 = arith.addf %16, %17 : vector<8x512xf32>
    %cst_12 = arith.constant 0.000000e+00 : f32
    %19 = vector.broadcast %cst_12 : f32 to vector<8x512xf32>
    %20 = arith.maximumf %18, %19 : vector<8x512xf32>
    %21 = arith.truncf %20 : vector<8x512xf32> to vector<8x512xbf16>
    %cst_13 = arith.constant dense<0.000000e+00> : vector<8x128xf32>
    %22 = tpu.matmul %21, %4, %cst_13 {dimension_numbers = #tpu.dot_dimension_numbers<[1], [0], [0], [1], [0, 0, 1, 1], [], []>} : vector<8x512xbf16>, vector<512x128xbf16>, vector<8x128xf32> -> vector<8x128xf32>
    %23 = arith.truncf %22 : vector<8x128xf32> to vector<8x128xbf16>
    %c0_14 = arith.constant 0 : index
    %c0_15 = arith.constant 0 : index
    %24 = vector.load %arg6[%c0_14, %c0_15] : memref<8x256xbf16, #tpu.memory_space<vmem>>, vector<8x128xbf16>
    tpu.vector_store %arg6[%c0_14, %c0_15], %23 {strides = array<i32>} : memref<8x256xbf16, #tpu.memory_space<vmem>>, vector<8x128xbf16>,
    %25 = vector.extract_strided_slice %13 {offsets = [0, 16], sizes = [8, 16], strides = [1, 1]} : vector<8x32xf32> to vector<8x16xf32>
    %26 = arith.truncf %25 : vector<8x16xf32> to vector<8x16xbf16>
    %cst_16 = arith.constant dense<0.000000e+00> : vector<8x512xf32>
    %27 = tpu.matmul %26, %3, %cst_16 {dimension_numbers = #tpu.dot_dimension_numbers<[1], [0], [0], [1], [0, 0, 1, 1], [], []>} : vector<8x16xbf16>, vector<16x512xbf16>, vector<8x512xf32> -> vector<8x512xf32>
    %28 = vector.broadcast %5 : vector<1x512xf32> to vector<8x512xf32>
    %29 = arith.addf %27, %28 : vector<8x512xf32>
    %cst_17 = arith.constant 0.000000e+00 : f32
    %30 = vector.broadcast %cst_17 : f32 to vector<8x512xf32>
    %31 = arith.maximumf %29, %30 : vector<8x512xf32>
    %32 = arith.truncf %31 : vector<8x512xf32> to vector<8x512xbf16>
    %cst_18 = arith.constant dense<0.000000e+00> : vector<8x128xf32>
    %33 = tpu.matmul %32, %4, %cst_18 {dimension_numbers = #tpu.dot_dimension_numbers<[1], [0], [0], [1], [0, 0, 1, 1], [], []>} : vector<8x512xbf16>, vector<512x128xbf16>, vector<8x128xf32> -> vector<8x128xf32>
    %34 = arith.truncf %33 : vector<8x128xf32> to vector<8x128xbf16>
    %c0_19 = arith.constant 0 : index
    %c128 = arith.constant 128 : index
    %35 = vector.load %arg6[%c0_19, %c128] : memref<8x256xbf16, #tpu.memory_space<vmem>>, vector<8x128xbf16>
    tpu.vector_store %arg6[%c0_19, %c128], %34 {strides = array<i32>} : memref<8x256xbf16, #tpu.memory_space<vmem>>, vector<8x128xbf16>,
    return
  }
  func.func @transform_0(%arg0: i32) -> (i32, i32) {
    %c0_i32 = arith.constant 0 : i32
    %c0_i32_0 = arith.constant 0 : i32
    return %arg0, %c0_i32 : i32, i32
  }
  func.func @transform_1(%arg0: i32) -> (i32, i32) {
    %c0_i32 = arith.constant 0 : i32
    %c0_i32_0 = arith.constant 0 : i32
    %c0_i32_1 = arith.constant 0 : i32
    return %c0_i32, %c0_i32_0 : i32, i32
  }
  func.func @transform_2(%arg0: i32) -> (i32, i32) {
    %c0_i32 = arith.constant 0 : i32
    %c0_i32_0 = arith.constant 0 : i32
    %c0_i32_1 = arith.constant 0 : i32
    return %c0_i32, %c0_i32_0 : i32, i32
  }
  func.func @transform_3(%arg0: i32) -> (i32, i32) {
    %c0_i32 = arith.constant 0 : i32
    %c0_i32_0 = arith.constant 0 : i32
    %c0_i32_1 = arith.constant 0 : i32
    return %c0_i32, %c0_i32_0 : i32, i32
  }
  func.func @transform_4(%arg0: i32) -> (i32, i32) {
    %c0_i32 = arith.constant 0 : i32
    %c0_i32_0 = arith.constant 0 : i32
    %c0_i32_1 = arith.constant 0 : i32
    return %c0_i32, %c0_i32_0 : i32, i32
  }
  func.func @transform_5(%arg0: i32) -> (i32, i32) {
    %c0_i32 = arith.constant 0 : i32
    %c0_i32_0 = arith.constant 0 : i32
    return %arg0, %c0_i32 : i32, i32
  }
}

</mosaic_0001>

<llo_original>
// kernel: tpu_custom_call.1
$region0: #{tpu_custom_call.1}
  #allocation0 [shape = 'u32[]', space=smem, size = 0x4, offset = 0x4, fixed_abs, tag = 'smem constant byte address 0x4 - core index']
  #allocation1 [shape = 'u32[72,128]{1,0:T(1,128)}', space=vmem, size = 0x9000, scoped, tag = 'internal scratch']
  %s0 = inlined_call_operand.hbm [shape: bf16[8,8], index: 0, kind: input, shape index: {}]
  %s1 = inlined_call_operand.hbm [shape: bf16[8,32], index: 1, kind: input, shape index: {}]
  %s2 = inlined_call_operand.hbm [shape: bf16[16,512], index: 2, kind: input, shape index: {}]
  %s3 = inlined_call_operand.hbm [shape: f32[1,512], index: 3, kind: input, shape index: {}]
  %s4 = inlined_call_operand.hbm [shape: bf16[512,128], index: 4, kind: input, shape index: {}]
  %s5 = inlined_call_operand.hbm [shape: bf16[8,256], index: 5, kind: output, shape index: {}]
  %s6 = sld [smem:[#allocation0]]
  $region50: #{tpu_custom_call.1} parent=0
    _
  %s8 = ssub.s32 1, %s6
  %s9 = scalar_select 0, %s8, %s6
  $region1: #{tpu_custom_call.1} parent=0
    #allocation2 [shape = 'u8[2048]{0}', space=vmem, size = 0x800, scoped, tag = 'input window, operand 0, single buffered']
    #allocation3 [shape = 's32[1]{0}', space=sflag, size = 0x4, scoped, tag = 'scoped memory for tpu_custom_call.1']
    #allocation4 [shape = 's32[1]{0}', space=sflag, size = 0x4, scoped, tag = 'scoped memory for tpu_custom_call.1']
    #allocation5 [shape = 'u8[2048]{0}', space=vmem, size = 0x800, scoped, tag = 'input window, operand 1, single buffered']
    #allocation6 [shape = 's32[1]{0}', space=sflag, size = 0x4, scoped, tag = 'scoped memory for tpu_custom_call.1']
    #allocation7 [shape = 'u8[16384]{0}', space=vmem, size = 0x4000, scoped, tag = 'input window, operand 2, single buffered']
    #allocation8 [shape = 'u8[2048]{0}', space=vmem, size = 0x800, scoped, tag = 'input window, operand 3, single buffered']
    #allocation9 [shape = 's32[1]{0}', space=sflag, size = 0x4, scoped, tag = 'scoped memory for tpu_custom_call.1']
    #allocation10 [shape = 'u8[131072]{0}', space=vmem, size = 0x20000, scoped, tag = 'input window, operand 4, single buffered']
    #allocation11 [shape = 'u8[4096]{0}', space=vmem, size = 0x1000, scoped, tag = 'output window, operand 0, single buffered']
    %10 = vsyncpa [#allocation3], 0
    %11 = vsyncpa [#allocation6], 0
    %12 = vsyncpa [#allocation9], 0
    %13 = vsyncpa [#allocation4], 0
    // Predicated region
    $region2: #{tpu_custom_call.1} parent=1 // pred_check
      _
    $region3: #{tpu_custom_call.1} parent=1 // pred_check_branch
      %15 = sbr.rel (0) target = $region5
    $region4: #{tpu_custom_call.1} parent=1 // pred_region
      %17 = vsyncadd [#allocation3], 0
      %s19 = sshll.u32 %s0, 4
      %s20 = int_to_ptr.hbm [resolvable:$true] %s19
      %s21 = sshll.u32 [#allocation2], 4
      %s22 = int_to_ptr.vmem [resolvable:$true] %s21
      %24 = dma.hbm_to_vmem [thread:$0]  %s20, 64, %s22, [#allocation3]
    $region5: #{tpu_custom_call.1} parent=1 // pred_fallthru
      _
    // Predicated region
    $region6: #{tpu_custom_call.1} parent=1 // pred_check
      _
    $region7: #{tpu_custom_call.1} parent=1 // pred_check_branch
      %26 = sbr.rel (0) target = $region9
    $region8: #{tpu_custom_call.1} parent=1 // pred_region
      %28 = vsyncadd [#allocation6], 0
      %s30 = sshll.u32 %s1, 4
      %s31 = int_to_ptr.hbm [resolvable:$true] %s30
      %s32 = sshll.u32 [#allocation5], 4
      %s33 = int_to_ptr.vmem [resolvable:$true] %s32
      %35 = dma.hbm_to_vmem [thread:$0]  %s31, 64, %s33, [#allocation6]
    $region9: #{tpu_custom_call.1} parent=1 // pred_fallthru
      _
    // Predicated region
    $region10: #{tpu_custom_call.1} parent=1 // pred_check
      _
    $region11: #{tpu_custom_call.1} parent=1 // pred_check_branch
      %37 = sbr.rel (0) target = $region13
    $region12: #{tpu_custom_call.1} parent=1 // pred_region
      %39 = vsyncadd [#allocation6], 0
      %s40 = sshll.u32 %s2, 4
      %s41 = int_to_ptr.hbm [resolvable:$true] %s40
      %s42 = sshll.u32 [#allocation7], 4
      %s43 = int_to_ptr.vmem [resolvable:$true] %s42
      %48 = dma.hbm_to_vmem [thread:$0]  %s41, 512, %s43, [#allocation6], 256, 256, 16
    $region13: #{tpu_custom_call.1} parent=1 // pred_fallthru
      _
    // Predicated region
    $region14: #{tpu_custom_call.1} parent=1 // pred_check
      _
    $region15: #{tpu_custom_call.1} parent=1 // pred_check_branch
      %50 = sbr.rel (0) target = $region17
    $region16: #{tpu_custom_call.1} parent=1 // pred_region
      %52 = vsyncadd [#allocation9], 0
      %s54 = sshll.u32 %s3, 4
      %s55 = int_to_ptr.hbm [resolvable:$true] %s54
      %s56 = sshll.u32 [#allocation8], 4
      %s57 = int_to_ptr.vmem [resolvable:$true] %s56
      %59 = dma.hbm_to_vmem [thread:$0]  %s55, 64, %s57, [#allocation9]
    $region17: #{tpu_custom_call.1} parent=1 // pred_fallthru
      _
    // Predicated region
    $region18: #{tpu_custom_call.1} parent=1 // pred_check
      _
    $region19: #{tpu_custom_call.1} parent=1 // pred_check_branch
      %61 = sbr.rel (0) target = $region21
    $region20: #{tpu_custom_call.1} parent=1 // pred_region
      %63 = vsyncadd [#allocation9], 0
      %s64 = sshll.u32 %s4, 4
      %s65 = int_to_ptr.hbm [resolvable:$true] %s64
      %s66 = sshll.u32 [#allocation10], 4
      %s67 = int_to_ptr.vmem [resolvable:$true] %s66
      %72 = dma.hbm_to_vmem [thread:$0]  %s65, 4096, %s67, [#allocation9], 64, 64, 4
    $region21: #{tpu_custom_call.1} parent=1 // pred_fallthru
      _
    // Predicated region
    $region22: #{tpu_custom_call.1} parent=1 // pred_check
      _
    $region23: #{tpu_custom_call.1} parent=1 // pred_check_branch
      %74 = sbr.rel (0) target = $region25
    $region24: #{tpu_custom_call.1} parent=1 // pred_region
      %76 = dma.done [#allocation3], 64
    $region25: #{tpu_custom_call.1} parent=1 // pred_fallthru
      _
    // Predicated region
    $region26: #{tpu_custom_call.1} parent=1 // pred_check
      _
    $region27: #{tpu_custom_call.1} parent=1 // pred_check_branch
      %78 = sbr.rel (0) target = $region29
    $region28: #{tpu_custom_call.1} parent=1 // pred_region
      %80 = dma.done [#allocation6], 64
    $region29: #{tpu_custom_call.1} parent=1 // pred_fallthru
      _
    // Predicated region
    $region30: #{tpu_custom_call.1} parent=1 // pred_check
      _
    $region31: #{tpu_custom_call.1} parent=1 // pred_check_branch
      %82 = sbr.rel (0) target = $region33
    $region32: #{tpu_custom_call.1} parent=1 // pred_region
      %84 = dma.done [#allocation6], 512
    $region33: #{tpu_custom_call.1} parent=1 // pred_fallthru
      _
    // Predicated region
    $region34: #{tpu_custom_call.1} parent=1 // pred_check
      _
    $region35: #{tpu_custom_call.1} parent=1 // pred_check_branch
      %86 = sbr.rel (0) target = $region37
    $region36: #{tpu_custom_call.1} parent=1 // pred_region
      %88 = dma.done [#allocation9], 64
    $region37: #{tpu_custom_call.1} parent=1 // pred_fallthru
      _
    // Predicated region
    $region38: #{tpu_custom_call.1} parent=1 // pred_check
      _
    $region39: #{tpu_custom_call.1} parent=1 // pred_check_branch
      %90 = sbr.rel (0) target = $region41
    $region40: #{tpu_custom_call.1} parent=1 // pred_region
      %92 = dma.done [#allocation9], 4096
    $region41: #{tpu_custom_call.1} parent=1 // pred_fallthru
      _
    %s94 = smul.u32 0, 8
    %v95 = vld [vmem:[#allocation2] sm:$0xf]
    %v96 = vld [vmem:[#allocation7] sm:$0xff]
    %v97 = vld [vmem:[#allocation7 + $0x8] sm:$0xff]
    %v98 = vld [vmem:[#allocation7 + $0x10] sm:$0xff]
    %v99 = vld [vmem:[#allocation7 + $0x18] sm:$0xff]
    %v100 = vld [vmem:[#allocation10] sm:$0xf]
    %v101 = vld [vmem:[#allocation10 + $0x4] sm:$0xf]
    %v102 = vld [vmem:[#allocation10 + $0x8] sm:$0xf]
    %v103 = vld [vmem:[#allocation10 + $0xc] sm:$0xf]
    %v104 = vld [vmem:[#allocation10 + $0x10] sm:$0xf]
    %v105 = vld [vmem:[#allocation10 + $0x14] sm:$0xf]
    %v106 = vld [vmem:[#allocation10 + $0x18] sm:$0xf]
    %v107 = vld [vmem:[#allocation10 + $0x1c] sm:$0xf]
    %v108 = vld [vmem:[#allocation10 + $0x20] sm:$0xf]
    %v109 = vld [vmem:[#allocation10 + $0x24] sm:$0xf]
    %v110 = vld [vmem:[#allocation10 + $0x28] sm:$0xf]
    %v111 = vld [vmem:[#allocation10 + $0x2c] sm:$0xf]
    %v112 = vld [vmem:[#allocation10 + $0x30] sm:$0xf]
    %v113 = vld [vmem:[#allocation10 + $0x34] sm:$0xf]
    %v114 = vld [vmem:[#allocation10 + $0x38] sm:$0xf]
    %v115 = vld [vmem:[#allocation10 + $0x3c] sm:$0xf]
    %v116 = vld [vmem:[#allocation10 + $0x40] sm:$0xf]
    %v117 = vld [vmem:[#allocation10 + $0x44] sm:$0xf]
    %v118 = vld [vmem:[#allocation10 + $0x48] sm:$0xf]
    %v119 = vld [vmem:[#allocation10 + $0x4c] sm:$0xf]
    %v120 = vld [vmem:[#allocation10 + $0x50] sm:$0xf]
    %v121 = vld [vmem:[#allocation10 + $0x54] sm:$0xf]
    %v122 = vld [vmem:[#allocation10 + $0x58] sm:$0xf]
    %v123 = vld [vmem:[#allocation10 + $0x5c] sm:$0xf]
    %v124 = vld [vmem:[#allocation10 + $0x60] sm:$0xf]
    %v125 = vld [vmem:[#allocation10 + $0x64] sm:$0xf]
    %v126 = vld [vmem:[#allocation10 + $0x68] sm:$0xf]
    %v127 = vld [vmem:[#allocation10 + $0x6c] sm:$0xf]
    %v128 = vld [vmem:[#allocation10 + $0x70] sm:$0xf]
    %v129 = vld [vmem:[#allocation10 + $0x74] sm:$0xf]
    %v130 = vld [vmem:[#allocation10 + $0x78] sm:$0xf]
    %v131 = vld [vmem:[#allocation10 + $0x7c] sm:$0xf]
    %v132 = vld [vmem:[#allocation10 + $0x80] sm:$0xf]
    %v133 = vld [vmem:[#allocation10 + $0x84] sm:$0xf]
    %v134 = vld [vmem:[#allocation10 + $0x88] sm:$0xf]
    %v135 = vld [vmem:[#allocation10 + $0x8c] sm:$0xf]
    %v136 = vld [vmem:[#allocation10 + $0x90] sm:$0xf]
    %v137 = vld [vmem:[#allocation10 + $0x94] sm:$0xf]
    %v138 = vld [vmem:[#allocation10 + $0x98] sm:$0xf]
    %v139 = vld [vmem:[#allocation10 + $0x9c] sm:$0xf]
    %v140 = vld [vmem:[#allocation10 + $0xa0] sm:$0xf]
    %v141 = vld [vmem:[#allocation10 + $0xa4] sm:$0xf]
    %v142 = vld [vmem:[#allocation10 + $0xa8] sm:$0xf]
    %v143 = vld [vmem:[#allocation10 + $0xac] sm:$0xf]
    %v144 = vld [vmem:[#allocation10 + $0xb0] sm:$0xf]
    %v145 = vld [vmem:[#allocation10 + $0xb4] sm:$0xf]
    %v146 = vld [vmem:[#allocation10 + $0xb8] sm:$0xf]
    %v147 = vld [vmem:[#allocation10 + $0xbc] sm:$0xf]
    %v148 = vld [vmem:[#allocation10 + $0xc0] sm:$0xf]
    %v149 = vld [vmem:[#allocation10 + $0xc4] sm:$0xf]
    %v150 = vld [vmem:[#allocation10 + $0xc8] sm:$0xf]
    %v151 = vld [vmem:[#allocation10 + $0xcc] sm:$0xf]
    %v152 = vld [vmem:[#allocation10 + $0xd0] sm:$0xf]
    %v153 = vld [vmem:[#allocation10 + $0xd4] sm:$0xf]
    %v154 = vld [vmem:[#allocation10 + $0xd8] sm:$0xf]
    %v155 = vld [vmem:[#allocation10 + $0xdc] sm:$0xf]
    %v156 = vld [vmem:[#allocation10 + $0xe0] sm:$0xf]
    %v157 = vld [vmem:[#allocation10 + $0xe4] sm:$0xf]
    %v158 = vld [vmem:[#allocation10 + $0xe8] sm:$0xf]
    %v159 = vld [vmem:[#allocation10 + $0xec] sm:$0xf]
    %v160 = vld [vmem:[#allocation10 + $0xf0] sm:$0xf]
    %v161 = vld [vmem:[#allocation10 + $0xf4] sm:$0xf]
    %v162 = vld [vmem:[#allocation10 + $0xf8] sm:$0xf]
    %v163 = vld [vmem:[#allocation10 + $0xfc] sm:$0xf]
    %v164 = vld [vmem:[#allocation8] sm:$0xf]
    %v165 = vld [vmem:[#allocation5] sm:$0xf]
    %vm166 = vcmask 64512
    %v168 = vsel %vm166, %v95, 0
    %vm170 = vcmask 1043456
    %v172 = vsel %vm170, %v165, 0
    %174 = vmatpush.bf16.msra.mxu0 0
    %175 = vmatpush.bf16.msra.mxu0 0
    %176 = vmatpush.bf16.msra.mxu0 0
    %177 = vmatpush.bf16.msra.mxu0 0
    %178 = vmatpush.bf16.msra.mxu0 0
    %179 = vmatpush.bf16.msra.mxu0 0
    %180 = vmatpush.bf16.msra.mxu0 0
    %181 = vmatpush.bf16.msra.mxu0 %v172
    %182 = vmatmul.bf16.gmra.mxu0 %v168
    %v183 = vpop.f32.mrf.mxu0
    %v184 = vadd.f32 0.0, %v183
    %v185 = vpop.f32.mrf.mxu0
    %186 = vdwg.mxu0
    %s187 = sshra.s32 %s94, 3
    %s188 = sand.u32 %s94, 7
    %s189 = smul.addr %s187, 4
    %s190 = scalar_lea.vmem [#allocation5], %s189
    %v191 = vld [vmem:[%s190] sm:$0xf]
    %v192 = vunpack.c.l.bf16 %v191
    %v193 = vadd.f32 %v192, %v184
    %v194 = vpack.c.bf16 %v193, %v193
    %v196 = vperm.slane %v164, 0
    %v197 = vperm.slane %v164, 1
    %v198 = vperm.slane %v164, 2
    %v199 = vperm.slane %v164, 3
    %v208 = vunpack.c.l.b16 %v96
    %v209 = vunpack.c.h.b16 %v96
    %v210 = vunpack.c.l.b16 %v97
    %v211 = vunpack.c.h.b16 %v97
    %v212 = vunpack.c.l.b16 %v98
    %v213 = vunpack.c.h.b16 %v98
    %v214 = vunpack.c.l.b16 %v99
    %v215 = vunpack.c.h.b16 %v99
    %v216 = vpack.c.b16 %v212, %v208
    %v217 = vpack.c.b16 %v213, %v209
    %v218 = vpack.c.b16 %v214, %v210
    %v219 = vpack.c.b16 %v215, %v211
    %vm224 = vcmask 130048
    %v226 = vsel %vm224, %v194, 0
    %228 = vmatpush.bf16.msra.mxu0 0
    %229 = vmatpush.bf16.msra.mxu0 0
    %230 = vmatpush.bf16.msra.mxu0 0
    %231 = vmatpush.bf16.msra.mxu0 0
    %232 = vmatpush.bf16.msra.mxu0 0
    %233 = vmatpush.bf16.msra.mxu0 0
    %234 = vmatpush.bf16.msra.mxu0 0
    %235 = vmatpush.bf16.msra.mxu0 %v216
    %236 = vmatmul.bf16.gmra.mxu0 %v226
    %v237 = vpop.f32.mrf.mxu0
    %v238 = vadd.f32 %v196, %v237
    %v239 = vpop.f32.mrf.mxu0
    %240 = vdwg.mxu0
    %241 = vmatpush.bf16.msra.mxu0 0
    %242 = vmatpush.bf16.msra.mxu0 0
    %243 = vmatpush.bf16.msra.mxu0 0
    %244 = vmatpush.bf16.msra.mxu0 0
    %245 = vmatpush.bf16.msra.mxu0 0
    %246 = vmatpush.bf16.msra.mxu0 0
    %247 = vmatpush.bf16.msra.mxu0 0
    %248 = vmatpush.bf16.msra.mxu0 %v217
    %249 = vmatmul.bf16.gmra.mxu0 %v226
    %v250 = vpop.f32.mrf.mxu0
    %v251 = vadd.f32 %v197, %v250
    %v252 = vpop.f32.mrf.mxu0
    %253 = vdwg.mxu0
    %254 = vmatpush.bf16.msra.mxu0 0
    %255 = vmatpush.bf16.msra.mxu0 0
    %256 = vmatpush.bf16.msra.mxu0 0
    %257 = vmatpush.bf16.msra.mxu0 0
    %258 = vmatpush.bf16.msra.mxu0 0
    %259 = vmatpush.bf16.msra.mxu0 0
    %260 = vmatpush.bf16.msra.mxu0 0
    %261 = vmatpush.bf16.msra.mxu0 %v218
    %262 = vmatmul.bf16.gmra.mxu0 %v226
    %v263 = vpop.f32.mrf.mxu0
    %v264 = vadd.f32 %v198, %v263
    %v265 = vpop.f32.mrf.mxu0
    %266 = vdwg.mxu0
    %267 = vmatpush.bf16.msra.mxu0 0
    %268 = vmatpush.bf16.msra.mxu0 0
    %269 = vmatpush.bf16.msra.mxu0 0
    %270 = vmatpush.bf16.msra.mxu0 0
    %271 = vmatpush.bf16.msra.mxu0 0
    %272 = vmatpush.bf16.msra.mxu0 0
    %273 = vmatpush.bf16.msra.mxu0 0
    %274 = vmatpush.bf16.msra.mxu0 %v219
    %275 = vmatmul.bf16.gmra.mxu0 %v226
    %v276 = vpop.f32.mrf.mxu0
    %v277 = vadd.f32 %v199, %v276
    %v278 = vpop.f32.mrf.mxu0
    %279 = vdwg.mxu0
    %v280 = vmax.f32 %v238, 0.0
    %v281 = vmax.f32 %v251, 0.0
    %v282 = vmax.f32 %v264, 0.0
    %v283 = vmax.f32 %v277, 0.0
    %v284 = vpack.c.bf16 %v280, %v280
    %v285 = vpack.c.bf16 %v281, %v281
    %v286 = vpack.c.bf16 %v282, %v282
    %v287 = vpack.c.bf16 %v283, %v283
    %v352 = vunpack.c.l.b16 %v100
    %v353 = vunpack.c.l.b16 %v101
    %v354 = vunpack.c.l.b16 %v102
    %v355 = vunpack.c.l.b16 %v103
    %v356 = vunpack.c.l.b16 %v104
    %v357 = vunpack.c.l.b16 %v105
    %v358 = vunpack.c.l.b16 %v106
    %v359 = vunpack.c.l.b16 %v107
    %v360 = vunpack.c.l.b16 %v108
    %v361 = vunpack.c.l.b16 %v109
    %v362 = vunpack.c.l.b16 %v110
    %v363 = vunpack.c.l.b16 %v111
    %v364 = vunpack.c.l.b16 %v112
    %v365 = vunpack.c.l.b16 %v113
    %v366 = vunpack.c.l.b16 %v114
    %v367 = vunpack.c.l.b16 %v115
    %v368 = vunpack.c.l.b16 %v116
    %v369 = vunpack.c.l.b16 %v117
    %v370 = vunpack.c.l.b16 %v118
    %v371 = vunpack.c.l.b16 %v119
    %v372 = vunpack.c.l.b16 %v120
    %v373 = vunpack.c.l.b16 %v121
    %v374 = vunpack.c.l.b16 %v122
    %v375 = vunpack.c.l.b16 %v123
    %v376 = vunpack.c.l.b16 %v124
    %v377 = vunpack.c.l.b16 %v125
    %v378 = vunpack.c.l.b16 %v126
    %v379 = vunpack.c.l.b16 %v127
    %v380 = vunpack.c.l.b16 %v128
    %v381 = vunpack.c.l.b16 %v129
    %v382 = vunpack.c.l.b16 %v130
    %v383 = vunpack.c.l.b16 %v131
    %v384 = vunpack.c.l.b16 %v132
    %v385 = vunpack.c.l.b16 %v133
    %v386 = vunpack.c.l.b16 %v134
    %v387 = vunpack.c.l.b16 %v135
    %v388 = vunpack.c.l.b16 %v136
    %v389 = vunpack.c.l.b16 %v137
    %v390 = vunpack.c.l.b16 %v138
    %v391 = vunpack.c.l.b16 %v139
    %v392 = vunpack.c.l.b16 %v140
    %v393 = vunpack.c.l.b16 %v141
    %v394 = vunpack.c.l.b16 %v142
    %v395 = vunpack.c.l.b16 %v143
    %v396 = vunpack.c.l.b16 %v144
    %v397 = vunpack.c.l.b16 %v145
    %v398 = vunpack.c.l.b16 %v146
    %v399 = vunpack.c.l.b16 %v147
    %v400 = vunpack.c.l.b16 %v148
    %v401 = vunpack.c.l.b16 %v149
    %v402 = vunpack.c.l.b16 %v150
    %v403 = vunpack.c.l.b16 %v151
    %v404 = vunpack.c.l.b16 %v152
    %v405 = vunpack.c.l.b16 %v153
    %v406 = vunpack.c.l.b16 %v154
    %v407 = vunpack.c.l.b16 %v155
    %v408 = vunpack.c.l.b16 %v156
    %v409 = vunpack.c.l.b16 %v157
    %v410 = vunpack.c.l.b16 %v158
    %v411 = vunpack.c.l.b16 %v159
    %v412 = vunpack.c.l.b16 %v160
    %v413 = vunpack.c.l.b16 %v161
    %v414 = vunpack.c.l.b16 %v162
    %v415 = vunpack.c.l.b16 %v163
    %v416 = vpack.c.b16 %v353, %v352
    %v417 = vpack.c.b16 %v355, %v354
    %v418 = vpack.c.b16 %v357, %v356
    %v419 = vpack.c.b16 %v359, %v358
    %v420 = vpack.c.b16 %v361, %v360
    %v421 = vpack.c.b16 %v363, %v362
    %v422 = vpack.c.b16 %v365, %v364
    %v423 = vpack.c.b16 %v367, %v366
    %v424 = vpack.c.b16 %v369, %v368
    %v425 = vpack.c.b16 %v371, %v370
    %v426 = vpack.c.b16 %v373, %v372
    %v427 = vpack.c.b16 %v375, %v374
    %v428 = vpack.c.b16 %v377, %v376
    %v429 = vpack.c.b16 %v379, %v378
    %v430 = vpack.c.b16 %v381, %v380
    %v431 = vpack.c.b16 %v383, %v382
    %v432 = vpack.c.b16 %v385, %v384
    %v433 = vpack.c.b16 %v387, %v386
    %v434 = vpack.c.b16 %v389, %v388
    %v435 = vpack.c.b16 %v391, %v390
    %v436 = vpack.c.b16 %v393, %v392
    %v437 = vpack.c.b16 %v395, %v394
    %v438 = vpack.c.b16 %v397, %v396
    %v439 = vpack.c.b16 %v399, %v398
    %v440 = vpack.c.b16 %v401, %v400
    %v441 = vpack.c.b16 %v403, %v402
    %v442 = vpack.c.b16 %v405, %v404
    %v443 = vpack.c.b16 %v407, %v406
    %v444 = vpack.c.b16 %v409, %v408
    %v445 = vpack.c.b16 %v411, %v410
    %v446 = vpack.c.b16 %v413, %v412
    %v447 = vpack.c.b16 %v415, %v414
    %480 = vmatpush.bf16.msra.mxu0 %v423
    %481 = vmatpush.bf16.msra.mxu0 %v422
    %482 = vmatpush.bf16.msra.mxu0 %v421
    %483 = vmatpush.bf16.msra.mxu0 %v420
    %484 = vmatpush.bf16.msra.mxu0 %v419
    %485 = vmatpush.bf16.msra.mxu0 %v418
    %486 = vmatpush.bf16.msra.mxu0 %v417
    %487 = vmatpush.bf16.msra.mxu0 %v416
    %488 = vmatmul.bf16.gmra.mxu0 %v284
    %v489 = vpop.f32.mrf.mxu0
    %v490 = vadd.f32 0.0, %v489
    %v491 = vpop.f32.mrf.mxu0
    %492 = vdwg.mxu0
    %493 = vmatpush.bf16.msra.mxu0 %v431
    %494 = vmatpush.bf16.msra.mxu0 %v430
    %495 = vmatpush.bf16.msra.mxu0 %v429
    %496 = vmatpush.bf16.msra.mxu0 %v428
    %497 = vmatpush.bf16.msra.mxu0 %v427
    %498 = vmatpush.bf16.msra.mxu0 %v426
    %499 = vmatpush.bf16.msra.mxu0 %v425
    %500 = vmatpush.bf16.msra.mxu0 %v424
    %501 = vmatmul.bf16.gmra.mxu0 %v285
    %v502 = vpop.f32.mrf.mxu0
    %v503 = vadd.f32 %v490, %v502
    %v504 = vpop.f32.mrf.mxu0
    %505 = vdwg.mxu0
    %506 = vmatpush.bf16.msra.mxu0 %v439
    %507 = vmatpush.bf16.msra.mxu0 %v438
    %508 = vmatpush.bf16.msra.mxu0 %v437
    %509 = vmatpush.bf16.msra.mxu0 %v436
    %510 = vmatpush.bf16.msra.mxu0 %v435
    %511 = vmatpush.bf16.msra.mxu0 %v434
    %512 = vmatpush.bf16.msra.mxu0 %v433
    %513 = vmatpush.bf16.msra.mxu0 %v432
    %514 = vmatmul.bf16.gmra.mxu0 %v286
    %v515 = vpop.f32.mrf.mxu0
    %v516 = vadd.f32 %v503, %v515
    %v517 = vpop.f32.mrf.mxu0
    %518 = vdwg.mxu0
    %519 = vmatpush.bf16.msra.mxu0 %v447
    %520 = vmatpush.bf16.msra.mxu0 %v446
    %521 = vmatpush.bf16.msra.mxu0 %v445
    %522 = vmatpush.bf16.msra.mxu0 %v444
    %523 = vmatpush.bf16.msra.mxu0 %v443
    %524 = vmatpush.bf16.msra.mxu0 %v442
    %525 = vmatpush.bf16.msra.mxu0 %v441
    %526 = vmatpush.bf16.msra.mxu0 %v440
    %527 = vmatmul.bf16.gmra.mxu0 %v287
    %v528 = vpop.f32.mrf.mxu0
    %v529 = vadd.f32 %v516, %v528
    %v530 = vpop.f32.mrf.mxu0
    %531 = vdwg.mxu0
    %v532 = vpack.c.bf16 %v529, %v529
    %533 = vst [vmem:[#allocation11] sm:$0xf] %v532
    %535 = vrot.lane.b32.xlu0 %v194, 112
    %v536 = vpop.permute.xlu0 %535
    %v538 = vsel %vm224, %v536, 0
    %540 = vmatpush.bf16.msra.mxu0 0
    %541 = vmatpush.bf16.msra.mxu0 0
    %542 = vmatpush.bf16.msra.mxu0 0
    %543 = vmatpush.bf16.msra.mxu0 0
    %544 = vmatpush.bf16.msra.mxu0 0
    %545 = vmatpush.bf16.msra.mxu0 0
    %546 = vmatpush.bf16.msra.mxu0 0
    %547 = vmatpush.bf16.msra.mxu0 %v216
    %548 = vmatmul.bf16.gmra.mxu0 %v538
    %v549 = vpop.f32.mrf.mxu0
    %v550 = vadd.f32 %v196, %v549
    %v551 = vpop.f32.mrf.mxu0
    %552 = vdwg.mxu0
    %553 = vmatpush.bf16.msra.mxu0 0
    %554 = vmatpush.bf16.msra.mxu0 0
    %555 = vmatpush.bf16.msra.mxu0 0
    %556 = vmatpush.bf16.msra.mxu0 0
    %557 = vmatpush.bf16.msra.mxu0 0
    %558 = vmatpush.bf16.msra.mxu0 0
    %559 = vmatpush.bf16.msra.mxu0 0
    %560 = vmatpush.bf16.msra.mxu0 %v217
    %561 = vmatmul.bf16.gmra.mxu0 %v538
    %v562 = vpop.f32.mrf.mxu0
    %v563 = vadd.f32 %v197, %v562
    %v564 = vpop.f32.mrf.mxu0
    %565 = vdwg.mxu0
    %566 = vmatpush.bf16.msra.mxu0 0
    %567 = vmatpush.bf16.msra.mxu0 0
    %568 = vmatpush.bf16.msra.mxu0 0
    %569 = vmatpush.bf16.msra.mxu0 0
    %570 = vmatpush.bf16.msra.mxu0 0
    %571 = vmatpush.bf16.msra.mxu0 0
    %572 = vmatpush.bf16.msra.mxu0 0
    %573 = vmatpush.bf16.msra.mxu0 %v218
    %574 = vmatmul.bf16.gmra.mxu0 %v538
    %v575 = vpop.f32.mrf.mxu0
    %v576 = vadd.f32 %v198, %v575
    %v577 = vpop.f32.mrf.mxu0
    %578 = vdwg.mxu0
    %579 = vmatpush.bf16.msra.mxu0 0
    %580 = vmatpush.bf16.msra.mxu0 0
    %581 = vmatpush.bf16.msra.mxu0 0
    %582 = vmatpush.bf16.msra.mxu0 0
    %583 = vmatpush.bf16.msra.mxu0 0
    %584 = vmatpush.bf16.msra.mxu0 0
    %585 = vmatpush.bf16.msra.mxu0 0
    %586 = vmatpush.bf16.msra.mxu0 %v219
    %587 = vmatmul.bf16.gmra.mxu0 %v538
    %v588 = vpop.f32.mrf.mxu0
    %v589 = vadd.f32 %v199, %v588
    %v590 = vpop.f32.mrf.mxu0
    %591 = vdwg.mxu0
    %v592 = vmax.f32 %v550, 0.0
    %v593 = vmax.f32 %v563, 0.0
    %v594 = vmax.f32 %v576, 0.0
    %v595 = vmax.f32 %v589, 0.0
    %v596 = vpack.c.bf16 %v592, %v592
    %v597 = vpack.c.bf16 %v593, %v593
    %v598 = vpack.c.bf16 %v594, %v594
    %v599 = vpack.c.bf16 %v595, %v595
    %600 = vmatpush.bf16.msra.mxu0 %v423
    %601 = vmatpush.bf16.msra.mxu0 %v422
    %602 = vmatpush.bf16.msra.mxu0 %v421
    %603 = vmatpush.bf16.msra.mxu0 %v420
    %604 = vmatpush.bf16.msra.mxu0 %v419
    %605 = vmatpush.bf16.msra.mxu0 %v418
    %606 = vmatpush.bf16.msra.mxu0 %v417
    %607 = vmatpush.bf16.msra.mxu0 %v416
    %608 = vmatmul.bf16.gmra.mxu0 %v596
    %v609 = vpop.f32.mrf.mxu0
    %v610 = vadd.f32 0.0, %v609
    %v611 = vpop.f32.mrf.mxu0
    %612 = vdwg.mxu0
    %613 = vmatpush.bf16.msra.mxu0 %v431
    %614 = vmatpush.bf16.msra.mxu0 %v430
    %615 = vmatpush.bf16.msra.mxu0 %v429
    %616 = vmatpush.bf16.msra.mxu0 %v428
    %617 = vmatpush.bf16.msra.mxu0 %v427
    %618 = vmatpush.bf16.msra.mxu0 %v426
    %619 = vmatpush.bf16.msra.mxu0 %v425
    %620 = vmatpush.bf16.msra.mxu0 %v424
    %621 = vmatmul.bf16.gmra.mxu0 %v597
    %v622 = vpop.f32.mrf.mxu0
    %v623 = vadd.f32 %v610, %v622
    %v624 = vpop.f32.mrf.mxu0
    %625 = vdwg.mxu0
    %626 = vmatpush.bf16.msra.mxu0 %v439
    %627 = vmatpush.bf16.msra.mxu0 %v438
    %628 = vmatpush.bf16.msra.mxu0 %v437
    %629 = vmatpush.bf16.msra.mxu0 %v436
    %630 = vmatpush.bf16.msra.mxu0 %v435
    %631 = vmatpush.bf16.msra.mxu0 %v434
    %632 = vmatpush.bf16.msra.mxu0 %v433
    %633 = vmatpush.bf16.msra.mxu0 %v432
    %634 = vmatmul.bf16.gmra.mxu0 %v598
    %v635 = vpop.f32.mrf.mxu0
    %v636 = vadd.f32 %v623, %v635
    %v637 = vpop.f32.mrf.mxu0
    %638 = vdwg.mxu0
    %639 = vmatpush.bf16.msra.mxu0 %v447
    %640 = vmatpush.bf16.msra.mxu0 %v446
    %641 = vmatpush.bf16.msra.mxu0 %v445
    %642 = vmatpush.bf16.msra.mxu0 %v444
    %643 = vmatpush.bf16.msra.mxu0 %v443
    %644 = vmatpush.bf16.msra.mxu0 %v442
    %645 = vmatpush.bf16.msra.mxu0 %v441
    %646 = vmatpush.bf16.msra.mxu0 %v440
    %647 = vmatmul.bf16.gmra.mxu0 %v599
    %v648 = vpop.f32.mrf.mxu0
    %v649 = vadd.f32 %v636, %v648
    %v650 = vpop.f32.mrf.mxu0
    %651 = vdwg.mxu0
    %v652 = vpack.c.bf16 %v649, %v649
    %653 = vst [vmem:[#allocation11 + $0x4] sm:$0xf] %v652
    // Predicated region
    $region42: #{tpu_custom_call.1} parent=1 // pred_check
      _
    $region43: #{tpu_custom_call.1} parent=1 // pred_check_branch
      %655 = sbr.rel (0) target = $region45
    $region44: #{tpu_custom_call.1} parent=1 // pred_region
      %657 = vsyncadd [#allocation4], 0
      %s659 = sshll.u32 [#allocation11], 4
      %s660 = int_to_ptr.vmem [resolvable:$true] %s659
      %s661 = sshll.u32 %s5, 4
      %s662 = int_to_ptr.hbm [resolvable:$true] %s661
      %664 = dma.vmem_to_hbm [thread:$0]  %s660, 128, %s662, [#allocation4]
    $region45: #{tpu_custom_call.1} parent=1 // pred_fallthru
      _
    // Predicated region
    $region46: #{tpu_custom_call.1} parent=1 // pred_check
      _
    $region47: #{tpu_custom_call.1} parent=1 // pred_check_branch
      %666 = sbr.rel (0) target = $region49
    $region48: #{tpu_custom_call.1} parent=1 // pred_region
      %668 = dma.done [#allocation4], 128
    $region49: #{tpu_custom_call.1} parent=1 // pred_fallthru
      _
    %669 = vsyncpa [#allocation3], 1
    %670 = vsyncpa [#allocation6], 1
    %671 = vsyncpa [#allocation9], 1
    %672 = vsyncpa [#allocation4], 1

</llo_original>
